<compile_context>
chip_gen: v5e
topology: v5e:2x2
jax: 0.10.0
libtpu: 0.0.40
codegen_flags: <defaults>
</compile_context>

<pallas_src>
import functools

import jax
import jax.numpy as jnp
from jax.experimental import pallas as pl
from jax.experimental.pallas import tpu as pltpu


def _round_up(x, m):
    return (x + m - 1) // m * m


# Keep the double-buffered VMEM working set comfortably below v7x's 64 MiB
# physical VMEM (v5e/v6e have 128 MiB, so v7x is the binding constraint).
_VMEM_WORKING_SET_BUDGET = 40 << 20
_VMEM_LIMIT_CAP = 56 << 20


def _single_k_bytes(tm, tn, K, in_isz, out_isz):
    # x / w / bias tiles double-buffered + output tile double-buffered.
    return 2 * (tm * K + K * tn + tn) * in_isz + 2 * tm * tn * out_isz


def _tiled_k_bytes(tm, tn, tk, in_isz, out_isz):
    return (2 * (tm * tk + tk * tn + tn) * in_isz
            + 2 * tm * tn * out_isz
            + tm * tn * 4)  # f32 accumulator scratch


def _scale_linear_single_k_kernel(x_ref, w_ref, b_ref, o_ref, *, scale):
    # Whole reduction in a single MXU pass: matmul -> +bias -> *scale -> cast.
    y = jnp.dot(x_ref[...], w_ref[...], preferred_element_type=jnp.float32)
    y = y + b_ref[...].astype(jnp.float32)
    o_ref[...] = (y * scale).astype(o_ref.dtype)


def _scale_linear_tiled_k_kernel(x_ref, w_ref, b_ref, o_ref, acc_ref, *, scale):
    k = pl.program_id(2)

    @pl.when(k == 0)
    def _():
        acc_ref[...] = jnp.zeros_like(acc_ref)

    acc_ref[...] += jnp.dot(
        x_ref[...], w_ref[...], preferred_element_type=jnp.float32
    )

    @pl.when(k == pl.num_programs(2) - 1)
    def _():
        y = acc_ref[...] + b_ref[...].astype(jnp.float32)
        o_ref[...] = (y * scale).astype(o_ref.dtype)


def scale_linear(x2d, w, b, scale, *, out_dtype=None, compute_dtype=None):
    """(x2d @ w + b) * scale fused in one Pallas TPU kernel.

    x2d: (M, K), w: (K, N), b: (N,).  `compute_dtype=jnp.bfloat16` casts the
    matmul inputs (accumulation stays f32) when model tolerance allows.
    """
    M, K = x2d.shape
    K2, N = w.shape
    assert K == K2 and b.shape == (N,)

    out_dtype = jnp.dtype(out_dtype if out_dtype is not None else x2d.dtype)
    if compute_dtype is not None:
        x2d = x2d.astype(compute_dtype)
        w = w.astype(compute_dtype)
    in_isz = max(jnp.dtype(x2d.dtype).itemsize, jnp.dtype(w.dtype).itemsize)
    out_isz = out_dtype.itemsize

    b2d = b.reshape(1, N)
    flops = 2 * M * N * K
    io_bytes = ((M * K + K * N) * in_isz
                + N * jnp.dtype(b.dtype).itemsize
                + M * N * out_isz)

    def clamp(cand, dim):
        # A block equal to the full array dim bypasses the (8, 128) divisibility
        # rule, so small/ragged dims never need padding; larger dims use aligned
        # tiles with a partial boundary block (pl.cdiv grid, OOB writes dropped).
        return dim if dim <= cand else cand

    # ---- preferred path: whole K reduction as a single tile ------------------
    single = None
    for cand_tm, cand_tn in ((512, 512), (256, 256), (128, 128)):
        ctm, ctn = clamp(cand_tm, M), clamp(cand_tn, N)
        if _single_k_bytes(ctm, ctn, K, in_isz, out_isz) <= _VMEM_WORKING_SET_BUDGET:
            single = (ctm, ctn)
            break

    if single is not None:
        tm, tn = single
        working = _single_k_bytes(tm, tn, K, in_isz, out_isz)
        vmem_limit = int(min(max(working + (8 << 20), 24 << 20), _VMEM_LIMIT_CAP))
        return pl.pallas_call(
            functools.partial(_scale_linear_single_k_kernel, scale=scale),
            out_shape=jax.ShapeDtypeStruct((M, N), out_dtype),
            grid_spec=pltpu.PrefetchScalarGridSpec(
                num_scalar_prefetch=0,
                grid=(pl.cdiv(M, tm), pl.cdiv(N, tn)),
                in_specs=[
                    pl.BlockSpec((tm, K), lambda i, j: (i, 0)),
                    pl.BlockSpec((K, tn), lambda i, j: (0, j)),
                    pl.BlockSpec((1, tn), lambda i, j: (0, j)),
                ],
                out_specs=pl.BlockSpec((tm, tn), lambda i, j: (i, j)),
            ),
            compiler_params=pltpu.CompilerParams(
                dimension_semantics=("parallel", "parallel"),
                vmem_limit_bytes=vmem_limit,
            ),
            cost_estimate=pl.CostEstimate(
                flops=flops, transcendentals=0, bytes_accessed=io_bytes),
        )(x2d, w, b2d)

    # ---- fallback: K too large for one tile -> 3-D grid + f32 accumulator ----
    tm, tn = clamp(512, M), clamp(512, N)
    tk = 2048
    while tk > 128 and _tiled_k_bytes(tm, tn, tk, in_isz, out_isz) > _VMEM_WORKING_SET_BUDGET:
        tk //= 2
    Kp = _round_up(K, tk)
    # Zero-padding K is exact (padded slices contribute 0 to the accumulator);
    # typical large K are already multiples of tk so this is usually a no-op.
    x_p = x2d if Kp == K else jnp.pad(x2d, ((0, 0), (0, Kp - K)))
    w_p = w if Kp == K else jnp.pad(w, ((0, Kp - K), (0, 0)))
    working = _tiled_k_bytes(tm, tn, tk, in_isz, out_isz)
    vmem_limit = int(min(max(working + (8 << 20), 24 << 20), _VMEM_LIMIT_CAP))
    return pl.pallas_call(
        functools.partial(_scale_linear_tiled_k_kernel, scale=scale),
        out_shape=jax.ShapeDtypeStruct((M, N), out_dtype),
        grid_spec=pltpu.PrefetchScalarGridSpec(
            num_scalar_prefetch=0,
            grid=(pl.cdiv(M, tm), pl.cdiv(N, tn), Kp // tk),
            in_specs=[
                pl.BlockSpec((tm, tk), lambda i, j, k: (i, k)),
                pl.BlockSpec((tk, tn), lambda i, j, k: (k, j)),
                pl.BlockSpec((1, tn), lambda i, j, k: (0, j)),
            ],
            out_specs=pl.BlockSpec((tm, tn), lambda i, j, k: (i, j)),
            scratch_shapes=[pltpu.VMEM((tm, tn), jnp.float32)],
        ),
        compiler_params=pltpu.CompilerParams(
            dimension_semantics=("parallel", "parallel", "arbitrary"),
            vmem_limit_bytes=vmem_limit,
        ),
        cost_estimate=pl.CostEstimate(
            flops=flops, transcendentals=0, bytes_accessed=io_bytes),
    )(x_p, w_p, b2d)


def scale_forward(x, w, b, scale, **kwargs):
    """Scale(scale, fn=Linear(H, H)).forward(x) for x of shape (B, S, H)."""
    B, S, H = x.shape
    y2d = scale_linear(x.reshape(B * S, H), w, b, scale, **kwargs)
    return y2d.reshape(B, S, -1)


if __name__ == "__main__":
    key = jax.random.PRNGKey(0)

    # --- canonical small demo: (B, S, H) = (2, 8, 32), scale = H**-0.5 --------
    B, S, H = 2, 8, 32
    scale = H ** -0.5
    kx, kw, kb = jax.random.split(key, 3)
    x = jax.random.normal(kx, (B, S, H), dtype=jnp.float32)
    # Deterministic "Linear(H, H)" parameters (synthetic, not a checkpoint).
    w = jax.random.normal(kw, (H, H), dtype=jnp.float32) * (1.0 / H ** 0.5)
    b = jax.random.normal(kb, (H,), dtype=jnp.float32) * 0.01

    out = jax.block_until_ready(scale_forward(x, w, b, scale))
    ref = (jnp.einsum("bsh,hn->bsn", x, w) + b) * scale
    assert out.shape == (B, S, H)
    assert jnp.allclose(out, ref, atol=1e-5, rtol=1e-5)

    # --- ragged M exercises the partial-boundary-block path (no wrapper pad) --
    B2, S2 = 2, 300  # M = 600 -> tm = 512, grid (2, 1) with a partial last tile
    x2 = jax.random.normal(jax.random.PRNGKey(1), (B2, S2, H), dtype=jnp.float32)
    out2 = jax.block_until_ready(scale_forward(x2, w, b, scale))
    ref2 = (jnp.einsum("bsh,hn->bsn", x2, w) + b) * scale
    assert out2.shape == (B2, S2, H)
    assert jnp.allclose(out2, ref2, atol=1e-5, rtol=1e-5)

    print("KERNEL_OK")
</pallas_src>

<mosaic_0001>
module attributes {stable_mosaic.version = 11 : i64} {
  func.func @_scale_linear_single_k_kernel(%arg0: i32, %arg1: i32, %arg2: memref<16x32xf32, #tpu.memory_space<vmem>>, %arg3: memref<32x32xf32, #tpu.memory_space<vmem>>, %arg4: memref<1x32xf32, #tpu.memory_space<vmem>>, %arg5: memref<16x32xf32, #tpu.memory_space<vmem>>) attributes {dimension_semantics = [#tpu.dimension_semantics<parallel>, #tpu.dimension_semantics<parallel>], iteration_bounds = array<i64: 1, 1>, scalar_prefetch = 0 : i64, scratch_operands = 0 : i64, tpu.core_type = #tpu.core_type<tc>, window_params = [{transform_indices = @transform_0, window_bounds = array<i64: 16, 32>}, {transform_indices = @transform_1, window_bounds = array<i64: 32, 32>}, {transform_indices = @transform_2, window_bounds = array<i64: 1, 32>}, {transform_indices = @transform_3, window_bounds = array<i64: 16, 32>}]} {
    %c0 = arith.constant 0 : index
    %c0_0 = arith.constant 0 : index
    %0 = vector.load %arg2[%c0, %c0_0] : memref<16x32xf32, #tpu.memory_space<vmem>>, vector<16x32xf32>
    %c0_1 = arith.constant 0 : index
    %c0_2 = arith.constant 0 : index
    %1 = vector.load %arg3[%c0_1, %c0_2] : memref<32x32xf32, #tpu.memory_space<vmem>>, vector<32x32xf32>
    %cst = arith.constant dense<0.000000e+00> : vector<16x32xf32>
    %2 = tpu.matmul %0, %1, %cst {dimension_numbers = #tpu.dot_dimension_numbers<[1], [0], [0], [1], [0, 0, 1, 1], [], []>} : vector<16x32xf32>, vector<32x32xf32>, vector<16x32xf32> -> vector<16x32xf32>
    %c0_3 = arith.constant 0 : index
    %c0_4 = arith.constant 0 : index
    %3 = vector.load %arg4[%c0_3, %c0_4] : memref<1x32xf32, #tpu.memory_space<vmem>>, vector<1x32xf32>
    %4 = vector.broadcast %3 : vector<1x32xf32> to vector<16x32xf32>
    %5 = arith.addf %2, %4 : vector<16x32xf32>
    %cst_5 = arith.constant 0.176776692 : f32
    %6 = vector.broadcast %cst_5 : f32 to vector<16x32xf32>
    %7 = arith.mulf %5, %6 : vector<16x32xf32>
    %c0_6 = arith.constant 0 : index
    %c0_7 = arith.constant 0 : index
    %8 = vector.load %arg5[%c0_6, %c0_7] : memref<16x32xf32, #tpu.memory_space<vmem>>, vector<16x32xf32>
    tpu.vector_store %arg5[%c0_6, %c0_7], %7 {strides = array<i32>} : memref<16x32xf32, #tpu.memory_space<vmem>>, vector<16x32xf32>,
    return
  }
  func.func @transform_0(%arg0: i32, %arg1: i32) -> (i32, i32) {
    %c0_i32 = arith.constant 0 : i32
    %c0_i32_0 = arith.constant 0 : i32
    return %arg0, %c0_i32 : i32, i32
  }
  func.func @transform_1(%arg0: i32, %arg1: i32) -> (i32, i32) {
    %c0_i32 = arith.constant 0 : i32
    %c0_i32_0 = arith.constant 0 : i32
    return %c0_i32, %arg1 : i32, i32
  }
  func.func @transform_2(%arg0: i32, %arg1: i32) -> (i32, i32) {
    %c0_i32 = arith.constant 0 : i32
    %c0_i32_0 = arith.constant 0 : i32
    return %c0_i32, %arg1 : i32, i32
  }
  func.func @transform_3(%arg0: i32, %arg1: i32) -> (i32, i32) {
    %c0_i32 = arith.constant 0 : i32
    return %arg0, %arg1 : i32, i32
  }
}

</mosaic_0001>

<llo_original>
// kernel: tpu_custom_call.1
$region0: #{tpu_custom_call.1}
  #allocation0 [shape = 'u32[]', space=smem, size = 0x4, offset = 0x4, fixed_abs, tag = 'smem constant byte address 0x4 - core index']
  #allocation1 [shape = 'u32[72,128]{1,0:T(1,128)}', space=vmem, size = 0x9000, scoped, tag = 'internal scratch']
  %s0 = inlined_call_operand.hbm [shape: f32[16,32], index: 0, kind: input, shape index: {}]
  %s1 = inlined_call_operand.hbm [shape: f32[32,32], index: 1, kind: input, shape index: {}]
  %s2 = inlined_call_operand.vmem [shape: f32[1,32], index: 2, kind: input, shape index: {}]
  %s3 = inlined_call_operand.hbm [shape: f32[16,32], index: 3, kind: output, shape index: {}]
  %s4 = sld [smem:[#allocation0]]
  $region30: #{tpu_custom_call.1} parent=0
    _
  %s6 = ssub.s32 1, %s4
  %s7 = scalar_select 0, %s6, %s4
  $region1: #{tpu_custom_call.1} parent=0
    #allocation2 [shape = 'u8[8192]{0}', space=vmem, size = 0x2000, scoped, tag = 'input window, operand 0, single buffered']
    #allocation3 [shape = 's32[1]{0}', space=sflag, size = 0x4, scoped, tag = 'scoped memory for tpu_custom_call.1']
    #allocation4 [shape = 's32[1]{0}', space=sflag, size = 0x4, scoped, tag = 'scoped memory for tpu_custom_call.1']
    #allocation5 [shape = 'u8[16384]{0}', space=vmem, size = 0x4000, scoped, tag = 'input window, operand 1, single buffered']
    #allocation6 [shape = 's32[1]{0}', space=sflag, size = 0x4, scoped, tag = 'scoped memory for tpu_custom_call.1']
    #allocation7 [shape = 'u8[8192]{0}', space=vmem, size = 0x2000, scoped, tag = 'output window, operand 0, single buffered']
    %8 = vsyncpa [#allocation3], 0
    %9 = vsyncpa [#allocation6], 0
    %10 = vsyncpa [#allocation4], 0
    // Predicated region
    $region2: #{tpu_custom_call.1} parent=1 // pred_check
      _
    $region3: #{tpu_custom_call.1} parent=1 // pred_check_branch
      %12 = sbr.rel (0) target = $region5
    $region4: #{tpu_custom_call.1} parent=1 // pred_region
      %14 = vsyncadd [#allocation3], 0
      %s15 = sshll.u32 %s0, 4
      %s16 = int_to_ptr.hbm [resolvable:$true] %s15
      %s17 = sshll.u32 [#allocation2], 4
      %s18 = int_to_ptr.vmem [resolvable:$true] %s17
      %23 = dma.hbm_to_vmem [thread:$0]  %s16, 256, %s18, [#allocation3], 128, 128, 8
    $region5: #{tpu_custom_call.1} parent=1 // pred_fallthru
      _
    // Predicated region
    $region6: #{tpu_custom_call.1} parent=1 // pred_check
      _
    $region7: #{tpu_custom_call.1} parent=1 // pred_check_branch
      %25 = sbr.rel (0) target = $region9
    $region8: #{tpu_custom_call.1} parent=1 // pred_region
      %27 = vsyncadd [#allocation6], 0
      %s28 = sshll.u32 %s1, 4
      %s29 = int_to_ptr.hbm [resolvable:$true] %s28
      %s30 = sshll.u32 [#allocation5], 4
      %s31 = int_to_ptr.vmem [resolvable:$true] %s30
      %36 = dma.hbm_to_vmem [thread:$0]  %s29, 512, %s31, [#allocation6], 128, 128, 8
    $region9: #{tpu_custom_call.1} parent=1 // pred_fallthru
      _
    // Predicated region
    $region10: #{tpu_custom_call.1} parent=1 // pred_check
      _
    $region11: #{tpu_custom_call.1} parent=1 // pred_check_branch
      %38 = sbr.rel (0) target = $region13
    $region12: #{tpu_custom_call.1} parent=1 // pred_region
      _
    $region13: #{tpu_custom_call.1} parent=1 // pred_fallthru
      _
    // Predicated region
    $region14: #{tpu_custom_call.1} parent=1 // pred_check
      _
    $region15: #{tpu_custom_call.1} parent=1 // pred_check_branch
      %40 = sbr.rel (0) target = $region17
    $region16: #{tpu_custom_call.1} parent=1 // pred_region
      %42 = dma.done [#allocation3], 256
    $region17: #{tpu_custom_call.1} parent=1 // pred_fallthru
      _
    // Predicated region
    $region18: #{tpu_custom_call.1} parent=1 // pred_check
      _
    $region19: #{tpu_custom_call.1} parent=1 // pred_check_branch
      %44 = sbr.rel (0) target = $region21
    $region20: #{tpu_custom_call.1} parent=1 // pred_region
      %46 = dma.done [#allocation6], 512
    $region21: #{tpu_custom_call.1} parent=1 // pred_fallthru
      _
    %v47 = vld [vmem:[#allocation2] sm:$0xff]
    %v48 = vld [vmem:[#allocation2 + $0x8] sm:$0xff]
    %v49 = vld [vmem:[#allocation5] sm:$0xff]
    %v50 = vld [vmem:[#allocation5 + $0x8] sm:$0xff]
    %v51 = vld [vmem:[#allocation5 + $0x10] sm:$0xff]
    %v52 = vld [vmem:[#allocation5 + $0x18] sm:$0xff]
    %v53 = vld [vmem:[%s2] sm:$0x1]
    %v55 = vperm.slane %v53, 0
    %vm57 = vcmask 261120
    %v59 = vsel %vm57, %v47, 0
    %v62 = vsel %vm57, %v48, 0
    %64 = vmatpush.msra.mxu0 0.0
    %65 = vmatpush.msra.mxu0 0.0
    %66 = vmatpush.msra.mxu0 0.0
    %67 = vmatpush.msra.mxu0 0.0
    %68 = vmatpush.msra.mxu0 0.0
    %69 = vmatpush.msra.mxu0 0.0
    %70 = vmatpush.msra.mxu0 0.0
    %71 = vmatpush.msra.mxu0 0.0
    %72 = vmatpush.msra.mxu0 0.0
    %73 = vmatpush.msra.mxu0 0.0
    %74 = vmatpush.msra.mxu0 0.0
    %75 = vmatpush.msra.mxu0 0.0
    %76 = vmatpush.msra.mxu0 %v52
    %77 = vmatpush.msra.mxu0 %v51
    %78 = vmatpush.msra.mxu0 %v50
    %79 = vmatpush.msra.mxu0 %v49
    %80 = vmatmul.f32.gmra.mxu0 %v59
    %v81 = vpop.f32.mrf.mxu0
    %v82 = vadd.f32 %v55, %v81
    %83 = vmatmul.f32.gmra.mxu0 %v62
    %v84 = vpop.f32.mrf.mxu0
    %v85 = vadd.f32 %v55, %v84
    %86 = vdwg.mxu0
    %v87 = vmul.f32 %v82, 0.17677669
    %v88 = vmul.f32 %v85, 0.17677669
    %89 = vst.msk [vmem:[#allocation7] sm:$0xff] %vm57, %v87
    %90 = vst.msk [vmem:[#allocation7 + $0x8] sm:$0xff] %vm57, %v88
    // Predicated region
    $region22: #{tpu_custom_call.1} parent=1 // pred_check
      _
    $region23: #{tpu_custom_call.1} parent=1 // pred_check_branch
      %92 = sbr.rel (0) target = $region25
    $region24: #{tpu_custom_call.1} parent=1 // pred_region
      %94 = vsyncadd [#allocation4], 0
      %s95 = sshll.u32 [#allocation7], 4
      %s96 = int_to_ptr.vmem [resolvable:$true] %s95
      %s97 = sshll.u32 %s3, 4
      %s98 = int_to_ptr.hbm [resolvable:$true] %s97
      %103 = dma.vmem_to_hbm [thread:$0]  %s96, 256, %s98, [#allocation4], 128, 128, 8
    $region25: #{tpu_custom_call.1} parent=1 // pred_fallthru
      _
    // Predicated region
    $region26: #{tpu_custom_call.1} parent=1 // pred_check
      _
    $region27: #{tpu_custom_call.1} parent=1 // pred_check_branch
      %105 = sbr.rel (0) target = $region29
    $region28: #{tpu_custom_call.1} parent=1 // pred_region
      %107 = dma.done [#allocation4], 256
    $region29: #{tpu_custom_call.1} parent=1 // pred_fallthru
      _
    %108 = vsyncpa [#allocation3], 1
    %109 = vsyncpa [#allocation6], 1
    %110 = vsyncpa [#allocation4], 1

</llo_original>
